<compile_context>
chip_gen: v7x
topology: tpu7x:2x2x1
jax: 0.10.0
libtpu: 0.0.40
codegen_flags: <defaults>
</compile_context>

<pallas_src>
import jax
import jax.numpy as jnp
from jax import lax
from jax.experimental import pallas as pl
from jax.experimental.pallas import tpu as pltpu


def _dw_conv_kernel(w_ref, b_ref, x_ref, o_ref):
    # w_ref: (9,) f32 SMEM (3x3 taps, row-major);  b_ref: (1,) f32 SMEM
    # x_ref: (H+2, W+2, CBLK) VMEM (pre-padded, channels-last, lane-dense)
    # o_ref: (H,   W,   CBLK) VMEM
    H, W, CB = o_ref.shape

    # Hoist the 9 tap scalars once (no repeated SMEM reads / broadcasts
    # inside the unrolled loop).
    w = [w_ref[k] for k in range(9)]

    acc = jnp.full((H, W, CB), b_ref[0], dtype=jnp.float32)
    # 3x3 cross-correlation (PyTorch Conv2d).  Shifts move only along the
    # leading (H) and sublane (W) axes; the lane (channel) axis is always
    # full-width, so all accesses are unmasked and no lane rotation occurs.
    for di in range(3):
        for dj in range(3):
            tap = x_ref[di:di + H, dj:dj + W, :].astype(jnp.float32)
            acc = acc + w[di * 3 + dj] * tap

    o_ref[...] = acc.astype(o_ref.dtype)


def _choose_cblk(nc, h, w, target_bytes=2 << 20):
    """Channel-block size: multiple of 128, input block ~target_bytes."""
    per_chan_bytes = (h + 2) * (w + 2) * 4
    cblk = max(128, (target_bytes // per_chan_bytes) // 128 * 128)
    nc_pad128 = pl.cdiv(nc, 128) * 128
    return int(min(cblk, nc_pad128))


def depthwise_conv_forward(x, weight, bias):
    """x: (N, C, H, W) f32; weight: (3, 3) f32; bias: (1,) f32."""
    N, C, H, W = x.shape
    NC = N * C
    CBLK = _choose_cblk(NC, H, W)
    C_pad = pl.cdiv(NC, CBLK) * CBLK
    n_blk = C_pad // CBLK

    # Channels-last relayout + zero padding done in HBM by XLA; the kernel
    # receives a pre-padded, lane-dense tile per grid step.
    xf = jnp.transpose(x.reshape(NC, H, W), (1, 2, 0))       # (H, W, NC)
    xp = jnp.pad(xf, ((1, 1), (1, 1), (0, C_pad - NC)))      # (H+2, W+2, C_pad)

    cost = pl.CostEstimate(
        flops=18 * C_pad * H * W,           # 9 MACs per output element
        transcendentals=0,
        bytes_accessed=8 * C_pad * H * W,   # f32 read + f32 write
    )

    out = pl.pallas_call(
        _dw_conv_kernel,
        out_shape=jax.ShapeDtypeStruct((H, W, C_pad), x.dtype),
        grid=(n_blk,),
        in_specs=[
            pl.BlockSpec(memory_space=pltpu.MemorySpace.SMEM),          # weight (9,)
            pl.BlockSpec(memory_space=pltpu.MemorySpace.SMEM),          # bias (1,)
            pl.BlockSpec((H + 2, W + 2, CBLK), lambda i: (0, 0, i)),    # x block
        ],
        out_specs=pl.BlockSpec((H, W, CBLK), lambda i: (0, 0, i)),
        compiler_params=pltpu.CompilerParams(
            dimension_semantics=("parallel",),
            vmem_limit_bytes=48 << 20,
        ),
        cost_estimate=cost,
    )(weight.reshape(9), bias, xp)

    out = jnp.transpose(out[:, :, :NC], (2, 0, 1))           # (NC, H, W)
    return out.reshape(N, C, H, W)


def _ref_forward(x, weight, bias):
    """Pure-JAX reference matching the PyTorch module (conv + bias only)."""
    N, C, H, W = x.shape
    xf = x.reshape(N * C, 1, H, W)
    out = lax.conv_general_dilated(
        xf, weight.reshape(1, 1, 3, 3),
        window_strides=(1, 1), padding=((1, 1), (1, 1)),
        dimension_numbers=("NCHW", "OIHW", "NCHW"))
    out = out + bias.reshape(1, 1, 1, 1)
    return out.reshape(N, C, H, W)


if __name__ == "__main__":
    key = jax.random.PRNGKey(0)
    kx, kw, kb = jax.random.split(key, 3)

    N, C, H, W = 2, 4, 16, 16
    x = jax.random.normal(kx, (N, C, H, W), dtype=jnp.float32)

    # Deterministic Conv2d(1, 1, 3) parameter init (PyTorch-style uniform bound)
    fan_in = 1 * 3 * 3
    bound = 1.0 / (fan_in ** 0.5)
    weight = jax.random.uniform(kw, (3, 3), jnp.float32, -bound, bound)
    bias = jax.random.uniform(kb, (1,), jnp.float32, -bound, bound)

    out = depthwise_conv_forward(x, weight, bias)
    out = jax.block_until_ready(out)

    ref = _ref_forward(x, weight, bias)
    assert out.shape == (N, C, H, W)
    assert jnp.allclose(out, ref, atol=1e-5, rtol=1e-5)

    print("KERNEL_OK")
</pallas_src>

<mosaic_0001>
module attributes {stable_mosaic.version = 11 : i64} {
  func.func @_dw_conv_kernel(%arg0: i32, %arg1: memref<9xf32, #tpu.memory_space<smem>>, %arg2: memref<1xf32, #tpu.memory_space<smem>>, %arg3: memref<18x18x128xf32, #tpu.memory_space<vmem>>, %arg4: memref<16x16x128xf32, #tpu.memory_space<vmem>>) attributes {dimension_semantics = [#tpu.dimension_semantics<parallel>], iteration_bounds = array<i64: 1>, scalar_prefetch = 0 : i64, scratch_operands = 0 : i64, tpu.core_type = #tpu.core_type<tc>, window_params = [{transform_indices = @transform_0, window_bounds = array<i64: 9>}, {transform_indices = @transform_1, window_bounds = array<i64: 1>}, {transform_indices = @transform_2, window_bounds = array<i64: 18, 18, 128>}, {transform_indices = @transform_3, window_bounds = array<i64: 16, 16, 128>}]} {
    %c0 = arith.constant 0 : index
    %0 = memref.load %arg1[%c0] : memref<9xf32, #tpu.memory_space<smem>>
    %c1 = arith.constant 1 : index
    %1 = memref.load %arg1[%c1] : memref<9xf32, #tpu.memory_space<smem>>
    %c2 = arith.constant 2 : index
    %2 = memref.load %arg1[%c2] : memref<9xf32, #tpu.memory_space<smem>>
    %c3 = arith.constant 3 : index
    %3 = memref.load %arg1[%c3] : memref<9xf32, #tpu.memory_space<smem>>
    %c4 = arith.constant 4 : index
    %4 = memref.load %arg1[%c4] : memref<9xf32, #tpu.memory_space<smem>>
    %c5 = arith.constant 5 : index
    %5 = memref.load %arg1[%c5] : memref<9xf32, #tpu.memory_space<smem>>
    %c6 = arith.constant 6 : index
    %6 = memref.load %arg1[%c6] : memref<9xf32, #tpu.memory_space<smem>>
    %c7 = arith.constant 7 : index
    %7 = memref.load %arg1[%c7] : memref<9xf32, #tpu.memory_space<smem>>
    %c8 = arith.constant 8 : index
    %8 = memref.load %arg1[%c8] : memref<9xf32, #tpu.memory_space<smem>>
    %c0_0 = arith.constant 0 : index
    %9 = memref.load %arg2[%c0_0] : memref<1xf32, #tpu.memory_space<smem>>
    %10 = vector.broadcast %9 : f32 to vector<16x16x128xf32>
    %c0_1 = arith.constant 0 : index
    %c0_2 = arith.constant 0 : index
    %c0_3 = arith.constant 0 : index
    %11 = vector.load %arg3[%c0_1, %c0_2, %c0_3] : memref<18x18x128xf32, #tpu.memory_space<vmem>>, vector<16x16x128xf32>
    %12 = vector.broadcast %0 : f32 to vector<16x16x128xf32>
    %13 = arith.mulf %12, %11 : vector<16x16x128xf32>
    %14 = arith.addf %10, %13 : vector<16x16x128xf32>
    %c0_4 = arith.constant 0 : index
    %c1_5 = arith.constant 1 : index
    %c0_6 = arith.constant 0 : index
    %15 = vector.load %arg3[%c0_4, %c1_5, %c0_6] : memref<18x18x128xf32, #tpu.memory_space<vmem>>, vector<16x16x128xf32>
    %16 = vector.broadcast %1 : f32 to vector<16x16x128xf32>
    %17 = arith.mulf %16, %15 : vector<16x16x128xf32>
    %18 = arith.addf %14, %17 : vector<16x16x128xf32>
    %c0_7 = arith.constant 0 : index
    %c2_8 = arith.constant 2 : index
    %c0_9 = arith.constant 0 : index
    %19 = vector.load %arg3[%c0_7, %c2_8, %c0_9] : memref<18x18x128xf32, #tpu.memory_space<vmem>>, vector<16x16x128xf32>
    %20 = vector.broadcast %2 : f32 to vector<16x16x128xf32>
    %21 = arith.mulf %20, %19 : vector<16x16x128xf32>
    %22 = arith.addf %18, %21 : vector<16x16x128xf32>
    %c1_10 = arith.constant 1 : index
    %c0_11 = arith.constant 0 : index
    %c0_12 = arith.constant 0 : index
    %23 = vector.load %arg3[%c1_10, %c0_11, %c0_12] : memref<18x18x128xf32, #tpu.memory_space<vmem>>, vector<16x16x128xf32>
    %24 = vector.broadcast %3 : f32 to vector<16x16x128xf32>
    %25 = arith.mulf %24, %23 : vector<16x16x128xf32>
    %26 = arith.addf %22, %25 : vector<16x16x128xf32>
    %c1_13 = arith.constant 1 : index
    %c1_14 = arith.constant 1 : index
    %c0_15 = arith.constant 0 : index
    %27 = vector.load %arg3[%c1_13, %c1_14, %c0_15] : memref<18x18x128xf32, #tpu.memory_space<vmem>>, vector<16x16x128xf32>
    %28 = vector.broadcast %4 : f32 to vector<16x16x128xf32>
    %29 = arith.mulf %28, %27 : vector<16x16x128xf32>
    %30 = arith.addf %26, %29 : vector<16x16x128xf32>
    %c1_16 = arith.constant 1 : index
    %c2_17 = arith.constant 2 : index
    %c0_18 = arith.constant 0 : index
    %31 = vector.load %arg3[%c1_16, %c2_17, %c0_18] : memref<18x18x128xf32, #tpu.memory_space<vmem>>, vector<16x16x128xf32>
    %32 = vector.broadcast %5 : f32 to vector<16x16x128xf32>
    %33 = arith.mulf %32, %31 : vector<16x16x128xf32>
    %34 = arith.addf %30, %33 : vector<16x16x128xf32>
    %c2_19 = arith.constant 2 : index
    %c0_20 = arith.constant 0 : index
    %c0_21 = arith.constant 0 : index
    %35 = vector.load %arg3[%c2_19, %c0_20, %c0_21] : memref<18x18x128xf32, #tpu.memory_space<vmem>>, vector<16x16x128xf32>
    %36 = vector.broadcast %6 : f32 to vector<16x16x128xf32>
    %37 = arith.mulf %36, %35 : vector<16x16x128xf32>
    %38 = arith.addf %34, %37 : vector<16x16x128xf32>
    %c2_22 = arith.constant 2 : index
    %c1_23 = arith.constant 1 : index
    %c0_24 = arith.constant 0 : index
    %39 = vector.load %arg3[%c2_22, %c1_23, %c0_24] : memref<18x18x128xf32, #tpu.memory_space<vmem>>, vector<16x16x128xf32>
    %40 = vector.broadcast %7 : f32 to vector<16x16x128xf32>
    %41 = arith.mulf %40, %39 : vector<16x16x128xf32>
    %42 = arith.addf %38, %41 : vector<16x16x128xf32>
    %c2_25 = arith.constant 2 : index
    %c2_26 = arith.constant 2 : index
    %c0_27 = arith.constant 0 : index
    %43 = vector.load %arg3[%c2_25, %c2_26, %c0_27] : memref<18x18x128xf32, #tpu.memory_space<vmem>>, vector<16x16x128xf32>
    %44 = vector.broadcast %8 : f32 to vector<16x16x128xf32>
    %45 = arith.mulf %44, %43 : vector<16x16x128xf32>
    %46 = arith.addf %42, %45 : vector<16x16x128xf32>
    %c0_28 = arith.constant 0 : index
    %c0_29 = arith.constant 0 : index
    %c0_30 = arith.constant 0 : index
    %47 = vector.load %arg4[%c0_28, %c0_29, %c0_30] : memref<16x16x128xf32, #tpu.memory_space<vmem>>, vector<16x16x128xf32>
    tpu.vector_store %arg4[%c0_28, %c0_29, %c0_30], %46 {strides = array<i32>} : memref<16x16x128xf32, #tpu.memory_space<vmem>>, vector<16x16x128xf32>,
    return
  }
  func.func @transform_0(%arg0: i32) -> i32 {
    %c0_i32 = arith.constant 0 : i32
    %c0_i32_0 = arith.constant 0 : i32
    return %c0_i32 : i32
  }
  func.func @transform_1(%arg0: i32) -> i32 {
    %c0_i32 = arith.constant 0 : i32
    %c0_i32_0 = arith.constant 0 : i32
    return %c0_i32 : i32
  }
  func.func @transform_2(%arg0: i32) -> (i32, i32, i32) {
    %c0_i32 = arith.constant 0 : i32
    %c0_i32_0 = arith.constant 0 : i32
    %c0_i32_1 = arith.constant 0 : i32
    return %c0_i32, %c0_i32_0, %arg0 : i32, i32, i32
  }
  func.func @transform_3(%arg0: i32) -> (i32, i32, i32) {
    %c0_i32 = arith.constant 0 : i32
    %c0_i32_0 = arith.constant 0 : i32
    %c0_i32_1 = arith.constant 0 : i32
    return %c0_i32, %c0_i32_0, %arg0 : i32, i32, i32
  }
}

</mosaic_0001>

<llo_original>
// kernel: tpu_custom_call.1
$region0: #{tpu_custom_call.1}
  #allocation0 [shape = 'u32[]', space=smem, size = 0x4, offset = 0x4, fixed_abs, tag = 'smem constant byte address 0x4 - core index']
  #allocation1 [shape = 'u32[144,128]{1,0:T(1,128)}', space=vmem, size = 0x12000, scoped, tag = 'internal scratch']
  #allocation2 [shape = 'f32[1]{0:T(128)S(6)}', space=smem, size = 0x200, scoped, tag = 'scoped memory for tpu_custom_call.1']
  %s0 = inlined_call_operand.vmem [shape: f32[9], index: 0, kind: input, shape index: {}]
  %s1 = inlined_call_operand.<no memory space> [shape: f32[1], index: 1, kind: input, shape index: {}]
  %s2 = inlined_call_operand.hbm [shape: f32[18,18,128], index: 2, kind: input, shape index: {}]
  %s3 = inlined_call_operand.hbm [shape: f32[16,16,128], index: 3, kind: output, shape index: {}]
  %s4 = sld [smem:[#allocation0]]
  $region30: #{tpu_custom_call.1} parent=0
    _
  %s6 = ssub.s32 1, %s4
  %s7 = scalar_select 0, %s6, %s4
  %8 = sst [smem:[#allocation2]] %s1
  $region1: #{tpu_custom_call.1} parent=0
    #allocation3 [shape = 'u8[512]{0}', space=smem, size = 0x200, scoped, tag = 'input window, operand 0, single buffered']
    #allocation4 [shape = 's32[1]{0}', space=sflag, size = 0x4, scoped, tag = 'scoped memory for tpu_custom_call.1']
    #allocation5 [shape = 's32[1]{0}', space=sflag, size = 0x4, scoped, tag = 'scoped memory for tpu_custom_call.1']
    #allocation6 [shape = 's32[1]{0}', space=sflag, size = 0x4, scoped, tag = 'scoped memory for tpu_custom_call.1']
    #allocation7 [shape = 'u8[221184]{0}', space=vmem, size = 0x36000, scoped, tag = 'input window, operand 2, single buffered']
    #allocation8 [shape = 'u8[131072]{0}', space=vmem, size = 0x20000, scoped, tag = 'output window, operand 0, single buffered']
    %9 = vsyncpa [#allocation6], 0
    %10 = vsyncpa [#allocation4], 0
    %11 = vsyncpa [#allocation5], 0
    // Predicated region
    $region2: #{tpu_custom_call.1} parent=1 // pred_check
      _
    $region3: #{tpu_custom_call.1} parent=1 // pred_check_branch
      %13 = sbr.rel (0) target = $region5
    $region4: #{tpu_custom_call.1} parent=1 // pred_region
      %s15 = ssub.s32 16, 16
      %16 = vsyncadd [#allocation6], %s15
      %s18 = sshll.u32 %s0, 4
      %s19 = int_to_ptr.vmem [resolvable:$true] %s18
      %21 = dma.vmem_to_smem %s19, 16, [#allocation3], [#allocation6]
    $region5: #{tpu_custom_call.1} parent=1 // pred_fallthru
      _
    // Predicated region
    $region6: #{tpu_custom_call.1} parent=1 // pred_check
      _
    $region7: #{tpu_custom_call.1} parent=1 // pred_check_branch
      %23 = sbr.rel (0) target = $region9
    $region8: #{tpu_custom_call.1} parent=1 // pred_region
      _
    $region9: #{tpu_custom_call.1} parent=1 // pred_fallthru
      _
    // Predicated region
    $region10: #{tpu_custom_call.1} parent=1 // pred_check
      _
    $region11: #{tpu_custom_call.1} parent=1 // pred_check_branch
      %25 = sbr.rel (0) target = $region13
    $region12: #{tpu_custom_call.1} parent=1 // pred_region
      %s27 = ssub.s32 6912, 6912
      %28 = vsyncadd [#allocation4], %s27
      %s29 = sshll.u32 [#allocation7], 4
      %s30 = int_to_ptr.vmem [resolvable:$true] %s29
      %35 = dma.hbm_to_vmem [thread:$0]  %s2, 6912, %s30, [#allocation4], 128, 128, 8
    $region13: #{tpu_custom_call.1} parent=1 // pred_fallthru
      _
    // Predicated region
    $region14: #{tpu_custom_call.1} parent=1 // pred_check
      _
    $region15: #{tpu_custom_call.1} parent=1 // pred_check_branch
      %37 = sbr.rel (0) target = $region17
    $region16: #{tpu_custom_call.1} parent=1 // pred_region
      %38 = dma.done [#allocation6], 16
    $region17: #{tpu_custom_call.1} parent=1 // pred_fallthru
      _
    // Predicated region
    $region18: #{tpu_custom_call.1} parent=1 // pred_check
      _
    $region19: #{tpu_custom_call.1} parent=1 // pred_check_branch
      %40 = sbr.rel (0) target = $region21
    $region20: #{tpu_custom_call.1} parent=1 // pred_region
      %41 = dma.done [#allocation4], 6912
    $region21: #{tpu_custom_call.1} parent=1 // pred_fallthru
      _
    %42 = sfence
    %s43 = sld [smem:[#allocation3]]
    %s44 = sld [smem:[#allocation3 + $0x1]]
    %s45 = sld [smem:[#allocation3 + $0x2]]
    %s46 = sld [smem:[#allocation3 + $0x3]]
    %s47 = sld [smem:[#allocation3 + $0x4]]
    %s48 = sld [smem:[#allocation3 + $0x5]]
    %s49 = sld [smem:[#allocation3 + $0x6]]
    %s50 = sld [smem:[#allocation3 + $0x7]]
    %s51 = sld [smem:[#allocation3 + $0x8]]
    %s52 = sld [smem:[#allocation2]]
    %v53 = vstv %s52
    %v54 = vld [vmem:[#allocation7] sm:$0xff]
    %v55 = vld [vmem:[#allocation7 + $0x8] sm:$0xff]
    %v56 = vld [vmem:[#allocation7 + $0x18] sm:$0xff]
    %v57 = vld [vmem:[#allocation7 + $0x20] sm:$0xff]
    %v58 = vld [vmem:[#allocation7 + $0x30] sm:$0xff]
    %v59 = vld [vmem:[#allocation7 + $0x38] sm:$0xff]
    %v60 = vld [vmem:[#allocation7 + $0x48] sm:$0xff]
    %v61 = vld [vmem:[#allocation7 + $0x50] sm:$0xff]
    %v62 = vld [vmem:[#allocation7 + $0x60] sm:$0xff]
    %v63 = vld [vmem:[#allocation7 + $0x68] sm:$0xff]
    %v64 = vld [vmem:[#allocation7 + $0x78] sm:$0xff]
    %v65 = vld [vmem:[#allocation7 + $0x80] sm:$0xff]
    %v66 = vld [vmem:[#allocation7 + $0x90] sm:$0xff]
    %v67 = vld [vmem:[#allocation7 + $0x98] sm:$0xff]
    %v68 = vld [vmem:[#allocation7 + $0xa8] sm:$0xff]
    %v69 = vld [vmem:[#allocation7 + $0xb0] sm:$0xff]
    %v70 = vld [vmem:[#allocation7 + $0xc0] sm:$0xff]
    %v71 = vld [vmem:[#allocation7 + $0xc8] sm:$0xff]
    %v72 = vld [vmem:[#allocation7 + $0xd8] sm:$0xff]
    %v73 = vld [vmem:[#allocation7 + $0xe0] sm:$0xff]
    %v74 = vld [vmem:[#allocation7 + $0xf0] sm:$0xff]
    %v75 = vld [vmem:[#allocation7 + $0xf8] sm:$0xff]
    %v76 = vld [vmem:[#allocation7 + $0x108] sm:$0xff]
    %v77 = vld [vmem:[#allocation7 + $0x110] sm:$0xff]
    %v78 = vld [vmem:[#allocation7 + $0x120] sm:$0xff]
    %v79 = vld [vmem:[#allocation7 + $0x128] sm:$0xff]
    %v80 = vld [vmem:[#allocation7 + $0x138] sm:$0xff]
    %v81 = vld [vmem:[#allocation7 + $0x140] sm:$0xff]
    %v82 = vld [vmem:[#allocation7 + $0x150] sm:$0xff]
    %v83 = vld [vmem:[#allocation7 + $0x158] sm:$0xff]
    %v84 = vld [vmem:[#allocation7 + $0x168] sm:$0xff]
    %v85 = vld [vmem:[#allocation7 + $0x170] sm:$0xff]
    %v86 = vstv %s43
    %v87 = vmul.f32 %v86, %v54
    %v88 = vmul.f32 %v86, %v55
    %v89 = vmul.f32 %v86, %v56
    %v90 = vmul.f32 %v86, %v57
    %v91 = vmul.f32 %v86, %v58
    %v92 = vmul.f32 %v86, %v59
    %v93 = vmul.f32 %v86, %v60
    %v94 = vmul.f32 %v86, %v61
    %v95 = vmul.f32 %v86, %v62
    %v96 = vmul.f32 %v86, %v63
    %v97 = vmul.f32 %v86, %v64
    %v98 = vmul.f32 %v86, %v65
    %v99 = vmul.f32 %v86, %v66
    %v100 = vmul.f32 %v86, %v67
    %v101 = vmul.f32 %v86, %v68
    %v102 = vmul.f32 %v86, %v69
    %v103 = vmul.f32 %v86, %v70
    %v104 = vmul.f32 %v86, %v71
    %v105 = vmul.f32 %v86, %v72
    %v106 = vmul.f32 %v86, %v73
    %v107 = vmul.f32 %v86, %v74
    %v108 = vmul.f32 %v86, %v75
    %v109 = vmul.f32 %v86, %v76
    %v110 = vmul.f32 %v86, %v77
    %v111 = vmul.f32 %v86, %v78
    %v112 = vmul.f32 %v86, %v79
    %v113 = vmul.f32 %v86, %v80
    %v114 = vmul.f32 %v86, %v81
    %v115 = vmul.f32 %v86, %v82
    %v116 = vmul.f32 %v86, %v83
    %v117 = vmul.f32 %v86, %v84
    %v118 = vmul.f32 %v86, %v85
    %v119 = vadd.f32 %v53, %v87
    %v120 = vadd.f32 %v53, %v88
    %v121 = vadd.f32 %v53, %v89
    %v122 = vadd.f32 %v53, %v90
    %v123 = vadd.f32 %v53, %v91
    %v124 = vadd.f32 %v53, %v92
    %v125 = vadd.f32 %v53, %v93
    %v126 = vadd.f32 %v53, %v94
    %v127 = vadd.f32 %v53, %v95
    %v128 = vadd.f32 %v53, %v96
    %v129 = vadd.f32 %v53, %v97
    %v130 = vadd.f32 %v53, %v98
    %v131 = vadd.f32 %v53, %v99
    %v132 = vadd.f32 %v53, %v100
    %v133 = vadd.f32 %v53, %v101
    %v134 = vadd.f32 %v53, %v102
    %v135 = vadd.f32 %v53, %v103
    %v136 = vadd.f32 %v53, %v104
    %v137 = vadd.f32 %v53, %v105
    %v138 = vadd.f32 %v53, %v106
    %v139 = vadd.f32 %v53, %v107
    %v140 = vadd.f32 %v53, %v108
    %v141 = vadd.f32 %v53, %v109
    %v142 = vadd.f32 %v53, %v110
    %v143 = vadd.f32 %v53, %v111
    %v144 = vadd.f32 %v53, %v112
    %v145 = vadd.f32 %v53, %v113
    %v146 = vadd.f32 %v53, %v114
    %v147 = vadd.f32 %v53, %v115
    %v148 = vadd.f32 %v53, %v116
    %v149 = vadd.f32 %v53, %v117
    %v150 = vadd.f32 %v53, %v118
    %v151 = vld [vmem:[#allocation7 + $0x1] sm:$0xff]
    %v152 = vld [vmem:[#allocation7 + $0x9] sm:$0xff]
    %v153 = vld [vmem:[#allocation7 + $0x19] sm:$0xff]
    %v154 = vld [vmem:[#allocation7 + $0x21] sm:$0xff]
    %v155 = vld [vmem:[#allocation7 + $0x31] sm:$0xff]
    %v156 = vld [vmem:[#allocation7 + $0x39] sm:$0xff]
    %v157 = vld [vmem:[#allocation7 + $0x49] sm:$0xff]
    %v158 = vld [vmem:[#allocation7 + $0x51] sm:$0xff]
    %v159 = vld [vmem:[#allocation7 + $0x61] sm:$0xff]
    %v160 = vld [vmem:[#allocation7 + $0x69] sm:$0xff]
    %v161 = vld [vmem:[#allocation7 + $0x79] sm:$0xff]
    %v162 = vld [vmem:[#allocation7 + $0x81] sm:$0xff]
    %v163 = vld [vmem:[#allocation7 + $0x91] sm:$0xff]
    %v164 = vld [vmem:[#allocation7 + $0x99] sm:$0xff]
    %v165 = vld [vmem:[#allocation7 + $0xa9] sm:$0xff]
    %v166 = vld [vmem:[#allocation7 + $0xb1] sm:$0xff]
    %v167 = vld [vmem:[#allocation7 + $0xc1] sm:$0xff]
    %v168 = vld [vmem:[#allocation7 + $0xc9] sm:$0xff]
    %v169 = vld [vmem:[#allocation7 + $0xd9] sm:$0xff]
    %v170 = vld [vmem:[#allocation7 + $0xe1] sm:$0xff]
    %v171 = vld [vmem:[#allocation7 + $0xf1] sm:$0xff]
    %v172 = vld [vmem:[#allocation7 + $0xf9] sm:$0xff]
    %v173 = vld [vmem:[#allocation7 + $0x109] sm:$0xff]
    %v174 = vld [vmem:[#allocation7 + $0x111] sm:$0xff]
    %v175 = vld [vmem:[#allocation7 + $0x121] sm:$0xff]
    %v176 = vld [vmem:[#allocation7 + $0x129] sm:$0xff]
    %v177 = vld [vmem:[#allocation7 + $0x139] sm:$0xff]
    %v178 = vld [vmem:[#allocation7 + $0x141] sm:$0xff]
    %v179 = vld [vmem:[#allocation7 + $0x151] sm:$0xff]
    %v180 = vld [vmem:[#allocation7 + $0x159] sm:$0xff]
    %v181 = vld [vmem:[#allocation7 + $0x169] sm:$0xff]
    %v182 = vld [vmem:[#allocation7 + $0x171] sm:$0xff]
    %v183 = vstv %s44
    %v184 = vmul.f32 %v183, %v151
    %v185 = vmul.f32 %v183, %v152
    %v186 = vmul.f32 %v183, %v153
    %v187 = vmul.f32 %v183, %v154
    %v188 = vmul.f32 %v183, %v155
    %v189 = vmul.f32 %v183, %v156
    %v190 = vmul.f32 %v183, %v157
    %v191 = vmul.f32 %v183, %v158
    %v192 = vmul.f32 %v183, %v159
    %v193 = vmul.f32 %v183, %v160
    %v194 = vmul.f32 %v183, %v161
    %v195 = vmul.f32 %v183, %v162
    %v196 = vmul.f32 %v183, %v163
    %v197 = vmul.f32 %v183, %v164
    %v198 = vmul.f32 %v183, %v165
    %v199 = vmul.f32 %v183, %v166
    %v200 = vmul.f32 %v183, %v167
    %v201 = vmul.f32 %v183, %v168
    %v202 = vmul.f32 %v183, %v169
    %v203 = vmul.f32 %v183, %v170
    %v204 = vmul.f32 %v183, %v171
    %v205 = vmul.f32 %v183, %v172
    %v206 = vmul.f32 %v183, %v173
    %v207 = vmul.f32 %v183, %v174
    %v208 = vmul.f32 %v183, %v175
    %v209 = vmul.f32 %v183, %v176
    %v210 = vmul.f32 %v183, %v177
    %v211 = vmul.f32 %v183, %v178
    %v212 = vmul.f32 %v183, %v179
    %v213 = vmul.f32 %v183, %v180
    %v214 = vmul.f32 %v183, %v181
    %v215 = vmul.f32 %v183, %v182
    %v216 = vadd.f32 %v119, %v184
    %v217 = vadd.f32 %v120, %v185
    %v218 = vadd.f32 %v121, %v186
    %v219 = vadd.f32 %v122, %v187
    %v220 = vadd.f32 %v123, %v188
    %v221 = vadd.f32 %v124, %v189
    %v222 = vadd.f32 %v125, %v190
    %v223 = vadd.f32 %v126, %v191
    %v224 = vadd.f32 %v127, %v192
    %v225 = vadd.f32 %v128, %v193
    %v226 = vadd.f32 %v129, %v194
    %v227 = vadd.f32 %v130, %v195
    %v228 = vadd.f32 %v131, %v196
    %v229 = vadd.f32 %v132, %v197
    %v230 = vadd.f32 %v133, %v198
    %v231 = vadd.f32 %v134, %v199
    %v232 = vadd.f32 %v135, %v200
    %v233 = vadd.f32 %v136, %v201
    %v234 = vadd.f32 %v137, %v202
    %v235 = vadd.f32 %v138, %v203
    %v236 = vadd.f32 %v139, %v204
    %v237 = vadd.f32 %v140, %v205
    %v238 = vadd.f32 %v141, %v206
    %v239 = vadd.f32 %v142, %v207
    %v240 = vadd.f32 %v143, %v208
    %v241 = vadd.f32 %v144, %v209
    %v242 = vadd.f32 %v145, %v210
    %v243 = vadd.f32 %v146, %v211
    %v244 = vadd.f32 %v147, %v212
    %v245 = vadd.f32 %v148, %v213
    %v246 = vadd.f32 %v149, %v214
    %v247 = vadd.f32 %v150, %v215
    %v248 = vld [vmem:[#allocation7 + $0x2] sm:$0xff]
    %v249 = vld [vmem:[#allocation7 + $0xa] sm:$0xff]
    %v250 = vld [vmem:[#allocation7 + $0x1a] sm:$0xff]
    %v251 = vld [vmem:[#allocation7 + $0x22] sm:$0xff]
    %v252 = vld [vmem:[#allocation7 + $0x32] sm:$0xff]
    %v253 = vld [vmem:[#allocation7 + $0x3a] sm:$0xff]
    %v254 = vld [vmem:[#allocation7 + $0x4a] sm:$0xff]
    %v255 = vld [vmem:[#allocation7 + $0x52] sm:$0xff]
    %v256 = vld [vmem:[#allocation7 + $0x62] sm:$0xff]
    %v257 = vld [vmem:[#allocation7 + $0x6a] sm:$0xff]
    %v258 = vld [vmem:[#allocation7 + $0x7a] sm:$0xff]
    %v259 = vld [vmem:[#allocation7 + $0x82] sm:$0xff]
    %v260 = vld [vmem:[#allocation7 + $0x92] sm:$0xff]
    %v261 = vld [vmem:[#allocation7 + $0x9a] sm:$0xff]
    %v262 = vld [vmem:[#allocation7 + $0xaa] sm:$0xff]
    %v263 = vld [vmem:[#allocation7 + $0xb2] sm:$0xff]
    %v264 = vld [vmem:[#allocation7 + $0xc2] sm:$0xff]
    %v265 = vld [vmem:[#allocation7 + $0xca] sm:$0xff]
    %v266 = vld [vmem:[#allocation7 + $0xda] sm:$0xff]
    %v267 = vld [vmem:[#allocation7 + $0xe2] sm:$0xff]
    %v268 = vld [vmem:[#allocation7 + $0xf2] sm:$0xff]
    %v269 = vld [vmem:[#allocation7 + $0xfa] sm:$0xff]
    %v270 = vld [vmem:[#allocation7 + $0x10a] sm:$0xff]
    %v271 = vld [vmem:[#allocation7 + $0x112] sm:$0xff]
    %v272 = vld [vmem:[#allocation7 + $0x122] sm:$0xff]
    %v273 = vld [vmem:[#allocation7 + $0x12a] sm:$0xff]
    %v274 = vld [vmem:[#allocation7 + $0x13a] sm:$0xff]
    %v275 = vld [vmem:[#allocation7 + $0x142] sm:$0xff]
    %v276 = vld [vmem:[#allocation7 + $0x152] sm:$0xff]
    %v277 = vld [vmem:[#allocation7 + $0x15a] sm:$0xff]
    %v278 = vld [vmem:[#allocation7 + $0x16a] sm:$0xff]
    %v279 = vld [vmem:[#allocation7 + $0x172] sm:$0xff]
    %v280 = vstv %s45
    %v281 = vmul.f32 %v280, %v248
    %v282 = vmul.f32 %v280, %v249
    %v283 = vmul.f32 %v280, %v250
    %v284 = vmul.f32 %v280, %v251
    %v285 = vmul.f32 %v280, %v252
    %v286 = vmul.f32 %v280, %v253
    %v287 = vmul.f32 %v280, %v254
    %v288 = vmul.f32 %v280, %v255
    %v289 = vmul.f32 %v280, %v256
    %v290 = vmul.f32 %v280, %v257
    %v291 = vmul.f32 %v280, %v258
    %v292 = vmul.f32 %v280, %v259
    %v293 = vmul.f32 %v280, %v260
    %v294 = vmul.f32 %v280, %v261
    %v295 = vmul.f32 %v280, %v262
    %v296 = vmul.f32 %v280, %v263
    %v297 = vmul.f32 %v280, %v264
    %v298 = vmul.f32 %v280, %v265
    %v299 = vmul.f32 %v280, %v266
    %v300 = vmul.f32 %v280, %v267
    %v301 = vmul.f32 %v280, %v268
    %v302 = vmul.f32 %v280, %v269
    %v303 = vmul.f32 %v280, %v270
    %v304 = vmul.f32 %v280, %v271
    %v305 = vmul.f32 %v280, %v272
    %v306 = vmul.f32 %v280, %v273
    %v307 = vmul.f32 %v280, %v274
    %v308 = vmul.f32 %v280, %v275
    %v309 = vmul.f32 %v280, %v276
    %v310 = vmul.f32 %v280, %v277
    %v311 = vmul.f32 %v280, %v278
    %v312 = vmul.f32 %v280, %v279
    %v313 = vadd.f32 %v216, %v281
    %v314 = vadd.f32 %v217, %v282
    %v315 = vadd.f32 %v218, %v283
    %v316 = vadd.f32 %v219, %v284
    %v317 = vadd.f32 %v220, %v285
    %v318 = vadd.f32 %v221, %v286
    %v319 = vadd.f32 %v222, %v287
    %v320 = vadd.f32 %v223, %v288
    %v321 = vadd.f32 %v224, %v289
    %v322 = vadd.f32 %v225, %v290
    %v323 = vadd.f32 %v226, %v291
    %v324 = vadd.f32 %v227, %v292
    %v325 = vadd.f32 %v228, %v293
    %v326 = vadd.f32 %v229, %v294
    %v327 = vadd.f32 %v230, %v295
    %v328 = vadd.f32 %v231, %v296
    %v329 = vadd.f32 %v232, %v297
    %v330 = vadd.f32 %v233, %v298
    %v331 = vadd.f32 %v234, %v299
    %v332 = vadd.f32 %v235, %v300
    %v333 = vadd.f32 %v236, %v301
    %v334 = vadd.f32 %v237, %v302
    %v335 = vadd.f32 %v238, %v303
    %v336 = vadd.f32 %v239, %v304
    %v337 = vadd.f32 %v240, %v305
    %v338 = vadd.f32 %v241, %v306
    %v339 = vadd.f32 %v242, %v307
    %v340 = vadd.f32 %v243, %v308
    %v341 = vadd.f32 %v244, %v309
    %v342 = vadd.f32 %v245, %v310
    %v343 = vadd.f32 %v246, %v311
    %v344 = vadd.f32 %v247, %v312
    %s345 = scalar_lea.vmem [#allocation7], 24
    %v346 = vld [vmem:[%s345] sm:$0xff]
    %v347 = vld [vmem:[%s345 + $0x8] sm:$0xff]
    %v348 = vld [vmem:[%s345 + $0x18] sm:$0xff]
    %v349 = vld [vmem:[%s345 + $0x20] sm:$0xff]
    %v350 = vld [vmem:[%s345 + $0x30] sm:$0xff]
    %v351 = vld [vmem:[%s345 + $0x38] sm:$0xff]
    %v352 = vld [vmem:[%s345 + $0x48] sm:$0xff]
    %v353 = vld [vmem:[%s345 + $0x50] sm:$0xff]
    %v354 = vld [vmem:[%s345 + $0x60] sm:$0xff]
    %v355 = vld [vmem:[%s345 + $0x68] sm:$0xff]
    %v356 = vld [vmem:[%s345 + $0x78] sm:$0xff]
    %v357 = vld [vmem:[%s345 + $0x80] sm:$0xff]
    %v358 = vld [vmem:[%s345 + $0x90] sm:$0xff]
    %v359 = vld [vmem:[%s345 + $0x98] sm:$0xff]
    %v360 = vld [vmem:[%s345 + $0xa8] sm:$0xff]
    %v361 = vld [vmem:[%s345 + $0xb0] sm:$0xff]
    %v362 = vld [vmem:[%s345 + $0xc0] sm:$0xff]
    %v363 = vld [vmem:[%s345 + $0xc8] sm:$0xff]
    %v364 = vld [vmem:[%s345 + $0xd8] sm:$0xff]
    %v365 = vld [vmem:[%s345 + $0xe0] sm:$0xff]
    %v366 = vld [vmem:[%s345 + $0xf0] sm:$0xff]
    %v367 = vld [vmem:[%s345 + $0xf8] sm:$0xff]
    %v368 = vld [vmem:[%s345 + $0x108] sm:$0xff]
    %v369 = vld [vmem:[%s345 + $0x110] sm:$0xff]
    %v370 = vld [vmem:[%s345 + $0x120] sm:$0xff]
    %v371 = vld [vmem:[%s345 + $0x128] sm:$0xff]
    %v372 = vld [vmem:[%s345 + $0x138] sm:$0xff]
    %v373 = vld [vmem:[%s345 + $0x140] sm:$0xff]
    %v374 = vld [vmem:[%s345 + $0x150] sm:$0xff]
    %v375 = vld [vmem:[%s345 + $0x158] sm:$0xff]
    %v376 = vld [vmem:[%s345 + $0x168] sm:$0xff]
    %v377 = vld [vmem:[%s345 + $0x170] sm:$0xff]
    %v378 = vstv %s46
    %v379 = vmul.f32 %v378, %v346
    %v380 = vmul.f32 %v378, %v347
    %v381 = vmul.f32 %v378, %v348
    %v382 = vmul.f32 %v378, %v349
    %v383 = vmul.f32 %v378, %v350
    %v384 = vmul.f32 %v378, %v351
    %v385 = vmul.f32 %v378, %v352
    %v386 = vmul.f32 %v378, %v353
    %v387 = vmul.f32 %v378, %v354
    %v388 = vmul.f32 %v378, %v355
    %v389 = vmul.f32 %v378, %v356
    %v390 = vmul.f32 %v378, %v357
    %v391 = vmul.f32 %v378, %v358
    %v392 = vmul.f32 %v378, %v359
    %v393 = vmul.f32 %v378, %v360
    %v394 = vmul.f32 %v378, %v361
    %v395 = vmul.f32 %v378, %v362
    %v396 = vmul.f32 %v378, %v363
    %v397 = vmul.f32 %v378, %v364
    %v398 = vmul.f32 %v378, %v365
    %v399 = vmul.f32 %v378, %v366
    %v400 = vmul.f32 %v378, %v367
    %v401 = vmul.f32 %v378, %v368
    %v402 = vmul.f32 %v378, %v369
    %v403 = vmul.f32 %v378, %v370
    %v404 = vmul.f32 %v378, %v371
    %v405 = vmul.f32 %v378, %v372
    %v406 = vmul.f32 %v378, %v373
    %v407 = vmul.f32 %v378, %v374
    %v408 = vmul.f32 %v378, %v375
    %v409 = vmul.f32 %v378, %v376
    %v410 = vmul.f32 %v378, %v377
    %v411 = vadd.f32 %v313, %v379
    %v412 = vadd.f32 %v314, %v380
    %v413 = vadd.f32 %v315, %v381
    %v414 = vadd.f32 %v316, %v382
    %v415 = vadd.f32 %v317, %v383
    %v416 = vadd.f32 %v318, %v384
    %v417 = vadd.f32 %v319, %v385
    %v418 = vadd.f32 %v320, %v386
    %v419 = vadd.f32 %v321, %v387
    %v420 = vadd.f32 %v322, %v388
    %v421 = vadd.f32 %v323, %v389
    %v422 = vadd.f32 %v324, %v390
    %v423 = vadd.f32 %v325, %v391
    %v424 = vadd.f32 %v326, %v392
    %v425 = vadd.f32 %v327, %v393
    %v426 = vadd.f32 %v328, %v394
    %v427 = vadd.f32 %v329, %v395
    %v428 = vadd.f32 %v330, %v396
    %v429 = vadd.f32 %v331, %v397
    %v430 = vadd.f32 %v332, %v398
    %v431 = vadd.f32 %v333, %v399
    %v432 = vadd.f32 %v334, %v400
    %v433 = vadd.f32 %v335, %v401
    %v434 = vadd.f32 %v336, %v402
    %v435 = vadd.f32 %v337, %v403
    %v436 = vadd.f32 %v338, %v404
    %v437 = vadd.f32 %v339, %v405
    %v438 = vadd.f32 %v340, %v406
    %v439 = vadd.f32 %v341, %v407
    %v440 = vadd.f32 %v342, %v408
    %v441 = vadd.f32 %v343, %v409
    %v442 = vadd.f32 %v344, %v410
    %v443 = vld [vmem:[%s345 + $0x1] sm:$0xff]
    %v444 = vld [vmem:[%s345 + $0x9] sm:$0xff]
    %v445 = vld [vmem:[%s345 + $0x19] sm:$0xff]
    %v446 = vld [vmem:[%s345 + $0x21] sm:$0xff]
    %v447 = vld [vmem:[%s345 + $0x31] sm:$0xff]
    %v448 = vld [vmem:[%s345 + $0x39] sm:$0xff]
    %v449 = vld [vmem:[%s345 + $0x49] sm:$0xff]
    %v450 = vld [vmem:[%s345 + $0x51] sm:$0xff]
    %v451 = vld [vmem:[%s345 + $0x61] sm:$0xff]
    %v452 = vld [vmem:[%s345 + $0x69] sm:$0xff]
    %v453 = vld [vmem:[%s345 + $0x79] sm:$0xff]
    %v454 = vld [vmem:[%s345 + $0x81] sm:$0xff]
    %v455 = vld [vmem:[%s345 + $0x91] sm:$0xff]
    %v456 = vld [vmem:[%s345 + $0x99] sm:$0xff]
    %v457 = vld [vmem:[%s345 + $0xa9] sm:$0xff]
    %v458 = vld [vmem:[%s345 + $0xb1] sm:$0xff]
    %v459 = vld [vmem:[%s345 + $0xc1] sm:$0xff]
    %v460 = vld [vmem:[%s345 + $0xc9] sm:$0xff]
    %v461 = vld [vmem:[%s345 + $0xd9] sm:$0xff]
    %v462 = vld [vmem:[%s345 + $0xe1] sm:$0xff]
    %v463 = vld [vmem:[%s345 + $0xf1] sm:$0xff]
    %v464 = vld [vmem:[%s345 + $0xf9] sm:$0xff]
    %v465 = vld [vmem:[%s345 + $0x109] sm:$0xff]
    %v466 = vld [vmem:[%s345 + $0x111] sm:$0xff]
    %v467 = vld [vmem:[%s345 + $0x121] sm:$0xff]
    %v468 = vld [vmem:[%s345 + $0x129] sm:$0xff]
    %v469 = vld [vmem:[%s345 + $0x139] sm:$0xff]
    %v470 = vld [vmem:[%s345 + $0x141] sm:$0xff]
    %v471 = vld [vmem:[%s345 + $0x151] sm:$0xff]
    %v472 = vld [vmem:[%s345 + $0x159] sm:$0xff]
    %v473 = vld [vmem:[%s345 + $0x169] sm:$0xff]
    %v474 = vld [vmem:[%s345 + $0x171] sm:$0xff]
    %v475 = vstv %s47
    %v476 = vmul.f32 %v475, %v443
    %v477 = vmul.f32 %v475, %v444
    %v478 = vmul.f32 %v475, %v445
    %v479 = vmul.f32 %v475, %v446
    %v480 = vmul.f32 %v475, %v447
    %v481 = vmul.f32 %v475, %v448
    %v482 = vmul.f32 %v475, %v449
    %v483 = vmul.f32 %v475, %v450
    %v484 = vmul.f32 %v475, %v451
    %v485 = vmul.f32 %v475, %v452
    %v486 = vmul.f32 %v475, %v453
    %v487 = vmul.f32 %v475, %v454
    %v488 = vmul.f32 %v475, %v455
    %v489 = vmul.f32 %v475, %v456
    %v490 = vmul.f32 %v475, %v457
    %v491 = vmul.f32 %v475, %v458
    %v492 = vmul.f32 %v475, %v459
    %v493 = vmul.f32 %v475, %v460
    %v494 = vmul.f32 %v475, %v461
    %v495 = vmul.f32 %v475, %v462
    %v496 = vmul.f32 %v475, %v463
    %v497 = vmul.f32 %v475, %v464
    %v498 = vmul.f32 %v475, %v465
    %v499 = vmul.f32 %v475, %v466
    %v500 = vmul.f32 %v475, %v467
    %v501 = vmul.f32 %v475, %v468
    %v502 = vmul.f32 %v475, %v469
    %v503 = vmul.f32 %v475, %v470
    %v504 = vmul.f32 %v475, %v471
    %v505 = vmul.f32 %v475, %v472
    %v506 = vmul.f32 %v475, %v473
    %v507 = vmul.f32 %v475, %v474
    %v508 = vadd.f32 %v411, %v476
    %v509 = vadd.f32 %v412, %v477
    %v510 = vadd.f32 %v413, %v478
    %v511 = vadd.f32 %v414, %v479
    %v512 = vadd.f32 %v415, %v480
    %v513 = vadd.f32 %v416, %v481
    %v514 = vadd.f32 %v417, %v482
    %v515 = vadd.f32 %v418, %v483
    %v516 = vadd.f32 %v419, %v484
    %v517 = vadd.f32 %v420, %v485
    %v518 = vadd.f32 %v421, %v486
    %v519 = vadd.f32 %v422, %v487
    %v520 = vadd.f32 %v423, %v488
    %v521 = vadd.f32 %v424, %v489
    %v522 = vadd.f32 %v425, %v490
    %v523 = vadd.f32 %v426, %v491
    %v524 = vadd.f32 %v427, %v492
    %v525 = vadd.f32 %v428, %v493
    %v526 = vadd.f32 %v429, %v494
    %v527 = vadd.f32 %v430, %v495
    %v528 = vadd.f32 %v431, %v496
    %v529 = vadd.f32 %v432, %v497
    %v530 = vadd.f32 %v433, %v498
    %v531 = vadd.f32 %v434, %v499
    %v532 = vadd.f32 %v435, %v500
    %v533 = vadd.f32 %v436, %v501
    %v534 = vadd.f32 %v437, %v502
    %v535 = vadd.f32 %v438, %v503
    %v536 = vadd.f32 %v439, %v504
    %v537 = vadd.f32 %v440, %v505
    %v538 = vadd.f32 %v441, %v506
    %v539 = vadd.f32 %v442, %v507
    %v540 = vld [vmem:[%s345 + $0x2] sm:$0xff]
    %v541 = vld [vmem:[%s345 + $0xa] sm:$0xff]
    %v542 = vld [vmem:[%s345 + $0x1a] sm:$0xff]
    %v543 = vld [vmem:[%s345 + $0x22] sm:$0xff]
    %v544 = vld [vmem:[%s345 + $0x32] sm:$0xff]
    %v545 = vld [vmem:[%s345 + $0x3a] sm:$0xff]
    %v546 = vld [vmem:[%s345 + $0x4a] sm:$0xff]
    %v547 = vld [vmem:[%s345 + $0x52] sm:$0xff]
    %v548 = vld [vmem:[%s345 + $0x62] sm:$0xff]
    %v549 = vld [vmem:[%s345 + $0x6a] sm:$0xff]
    %v550 = vld [vmem:[%s345 + $0x7a] sm:$0xff]
    %v551 = vld [vmem:[%s345 + $0x82] sm:$0xff]
    %v552 = vld [vmem:[%s345 + $0x92] sm:$0xff]
    %v553 = vld [vmem:[%s345 + $0x9a] sm:$0xff]
    %v554 = vld [vmem:[%s345 + $0xaa] sm:$0xff]
    %v555 = vld [vmem:[%s345 + $0xb2] sm:$0xff]
    %v556 = vld [vmem:[%s345 + $0xc2] sm:$0xff]
    %v557 = vld [vmem:[%s345 + $0xca] sm:$0xff]
    %v558 = vld [vmem:[%s345 + $0xda] sm:$0xff]
    %v559 = vld [vmem:[%s345 + $0xe2] sm:$0xff]
    %v560 = vld [vmem:[%s345 + $0xf2] sm:$0xff]
    %v561 = vld [vmem:[%s345 + $0xfa] sm:$0xff]
    %v562 = vld [vmem:[%s345 + $0x10a] sm:$0xff]
    %v563 = vld [vmem:[%s345 + $0x112] sm:$0xff]
    %v564 = vld [vmem:[%s345 + $0x122] sm:$0xff]
    %v565 = vld [vmem:[%s345 + $0x12a] sm:$0xff]
    %v566 = vld [vmem:[%s345 + $0x13a] sm:$0xff]
    %v567 = vld [vmem:[%s345 + $0x142] sm:$0xff]
    %v568 = vld [vmem:[%s345 + $0x152] sm:$0xff]
    %v569 = vld [vmem:[%s345 + $0x15a] sm:$0xff]
    %v570 = vld [vmem:[%s345 + $0x16a] sm:$0xff]
    %v571 = vld [vmem:[%s345 + $0x172] sm:$0xff]
    %v572 = vstv %s48
    %v573 = vmul.f32 %v572, %v540
    %v574 = vmul.f32 %v572, %v541
    %v575 = vmul.f32 %v572, %v542
    %v576 = vmul.f32 %v572, %v543
    %v577 = vmul.f32 %v572, %v544
    %v578 = vmul.f32 %v572, %v545
    %v579 = vmul.f32 %v572, %v546
    %v580 = vmul.f32 %v572, %v547
    %v581 = vmul.f32 %v572, %v548
    %v582 = vmul.f32 %v572, %v549
    %v583 = vmul.f32 %v572, %v550
    %v584 = vmul.f32 %v572, %v551
    %v585 = vmul.f32 %v572, %v552
    %v586 = vmul.f32 %v572, %v553
    %v587 = vmul.f32 %v572, %v554
    %v588 = vmul.f32 %v572, %v555
    %v589 = vmul.f32 %v572, %v556
    %v590 = vmul.f32 %v572, %v557
    %v591 = vmul.f32 %v572, %v558
    %v592 = vmul.f32 %v572, %v559
    %v593 = vmul.f32 %v572, %v560
    %v594 = vmul.f32 %v572, %v561
    %v595 = vmul.f32 %v572, %v562
    %v596 = vmul.f32 %v572, %v563
    %v597 = vmul.f32 %v572, %v564
    %v598 = vmul.f32 %v572, %v565
    %v599 = vmul.f32 %v572, %v566
    %v600 = vmul.f32 %v572, %v567
    %v601 = vmul.f32 %v572, %v568
    %v602 = vmul.f32 %v572, %v569
    %v603 = vmul.f32 %v572, %v570
    %v604 = vmul.f32 %v572, %v571
    %v605 = vadd.f32 %v508, %v573
    %v606 = vadd.f32 %v509, %v574
    %v607 = vadd.f32 %v510, %v575
    %v608 = vadd.f32 %v511, %v576
    %v609 = vadd.f32 %v512, %v577
    %v610 = vadd.f32 %v513, %v578
    %v611 = vadd.f32 %v514, %v579
    %v612 = vadd.f32 %v515, %v580
    %v613 = vadd.f32 %v516, %v581
    %v614 = vadd.f32 %v517, %v582
    %v615 = vadd.f32 %v518, %v583
    %v616 = vadd.f32 %v519, %v584
    %v617 = vadd.f32 %v520, %v585
    %v618 = vadd.f32 %v521, %v586
    %v619 = vadd.f32 %v522, %v587
    %v620 = vadd.f32 %v523, %v588
    %v621 = vadd.f32 %v524, %v589
    %v622 = vadd.f32 %v525, %v590
    %v623 = vadd.f32 %v526, %v591
    %v624 = vadd.f32 %v527, %v592
    %v625 = vadd.f32 %v528, %v593
    %v626 = vadd.f32 %v529, %v594
    %v627 = vadd.f32 %v530, %v595
    %v628 = vadd.f32 %v531, %v596
    %v629 = vadd.f32 %v532, %v597
    %v630 = vadd.f32 %v533, %v598
    %v631 = vadd.f32 %v534, %v599
    %v632 = vadd.f32 %v535, %v600
    %v633 = vadd.f32 %v536, %v601
    %v634 = vadd.f32 %v537, %v602
    %v635 = vadd.f32 %v538, %v603
    %v636 = vadd.f32 %v539, %v604
    %s637 = scalar_lea.vmem [#allocation7], 48
    %v638 = vld [vmem:[%s637] sm:$0xff]
    %v639 = vld [vmem:[%s637 + $0x8] sm:$0xff]
    %v640 = vld [vmem:[%s637 + $0x18] sm:$0xff]
    %v641 = vld [vmem:[%s637 + $0x20] sm:$0xff]
    %v642 = vld [vmem:[%s637 + $0x30] sm:$0xff]
    %v643 = vld [vmem:[%s637 + $0x38] sm:$0xff]
    %v644 = vld [vmem:[%s637 + $0x48] sm:$0xff]
    %v645 = vld [vmem:[%s637 + $0x50] sm:$0xff]
    %v646 = vld [vmem:[%s637 + $0x60] sm:$0xff]
    %v647 = vld [vmem:[%s637 + $0x68] sm:$0xff]
    %v648 = vld [vmem:[%s637 + $0x78] sm:$0xff]
    %v649 = vld [vmem:[%s637 + $0x80] sm:$0xff]
    %v650 = vld [vmem:[%s637 + $0x90] sm:$0xff]
    %v651 = vld [vmem:[%s637 + $0x98] sm:$0xff]
    %v652 = vld [vmem:[%s637 + $0xa8] sm:$0xff]
    %v653 = vld [vmem:[%s637 + $0xb0] sm:$0xff]
    %v654 = vld [vmem:[%s637 + $0xc0] sm:$0xff]
    %v655 = vld [vmem:[%s637 + $0xc8] sm:$0xff]
    %v656 = vld [vmem:[%s637 + $0xd8] sm:$0xff]
    %v657 = vld [vmem:[%s637 + $0xe0] sm:$0xff]
    %v658 = vld [vmem:[%s637 + $0xf0] sm:$0xff]
    %v659 = vld [vmem:[%s637 + $0xf8] sm:$0xff]
    %v660 = vld [vmem:[%s637 + $0x108] sm:$0xff]
    %v661 = vld [vmem:[%s637 + $0x110] sm:$0xff]
    %v662 = vld [vmem:[%s637 + $0x120] sm:$0xff]
    %v663 = vld [vmem:[%s637 + $0x128] sm:$0xff]
    %v664 = vld [vmem:[%s637 + $0x138] sm:$0xff]
    %v665 = vld [vmem:[%s637 + $0x140] sm:$0xff]
    %v666 = vld [vmem:[%s637 + $0x150] sm:$0xff]
    %v667 = vld [vmem:[%s637 + $0x158] sm:$0xff]
    %v668 = vld [vmem:[%s637 + $0x168] sm:$0xff]
    %v669 = vld [vmem:[%s637 + $0x170] sm:$0xff]
    %v670 = vstv %s49
    %v671 = vmul.f32 %v670, %v638
    %v672 = vmul.f32 %v670, %v639
    %v673 = vmul.f32 %v670, %v640
    %v674 = vmul.f32 %v670, %v641
    %v675 = vmul.f32 %v670, %v642
    %v676 = vmul.f32 %v670, %v643
    %v677 = vmul.f32 %v670, %v644
    %v678 = vmul.f32 %v670, %v645
    %v679 = vmul.f32 %v670, %v646
    %v680 = vmul.f32 %v670, %v647
    %v681 = vmul.f32 %v670, %v648
    %v682 = vmul.f32 %v670, %v649
    %v683 = vmul.f32 %v670, %v650
    %v684 = vmul.f32 %v670, %v651
    %v685 = vmul.f32 %v670, %v652
    %v686 = vmul.f32 %v670, %v653
    %v687 = vmul.f32 %v670, %v654
    %v688 = vmul.f32 %v670, %v655
    %v689 = vmul.f32 %v670, %v656
    %v690 = vmul.f32 %v670, %v657
    %v691 = vmul.f32 %v670, %v658
    %v692 = vmul.f32 %v670, %v659
    %v693 = vmul.f32 %v670, %v660
    %v694 = vmul.f32 %v670, %v661
    %v695 = vmul.f32 %v670, %v662
    %v696 = vmul.f32 %v670, %v663
    %v697 = vmul.f32 %v670, %v664
    %v698 = vmul.f32 %v670, %v665
    %v699 = vmul.f32 %v670, %v666
    %v700 = vmul.f32 %v670, %v667
    %v701 = vmul.f32 %v670, %v668
    %v702 = vmul.f32 %v670, %v669
    %v703 = vadd.f32 %v605, %v671
    %v704 = vadd.f32 %v606, %v672
    %v705 = vadd.f32 %v607, %v673
    %v706 = vadd.f32 %v608, %v674
    %v707 = vadd.f32 %v609, %v675
    %v708 = vadd.f32 %v610, %v676
    %v709 = vadd.f32 %v611, %v677
    %v710 = vadd.f32 %v612, %v678
    %v711 = vadd.f32 %v613, %v679
    %v712 = vadd.f32 %v614, %v680
    %v713 = vadd.f32 %v615, %v681
    %v714 = vadd.f32 %v616, %v682
    %v715 = vadd.f32 %v617, %v683
    %v716 = vadd.f32 %v618, %v684
    %v717 = vadd.f32 %v619, %v685
    %v718 = vadd.f32 %v620, %v686
    %v719 = vadd.f32 %v621, %v687
    %v720 = vadd.f32 %v622, %v688
    %v721 = vadd.f32 %v623, %v689
    %v722 = vadd.f32 %v624, %v690
    %v723 = vadd.f32 %v625, %v691
    %v724 = vadd.f32 %v626, %v692
    %v725 = vadd.f32 %v627, %v693
    %v726 = vadd.f32 %v628, %v694
    %v727 = vadd.f32 %v629, %v695
    %v728 = vadd.f32 %v630, %v696
    %v729 = vadd.f32 %v631, %v697
    %v730 = vadd.f32 %v632, %v698
    %v731 = vadd.f32 %v633, %v699
    %v732 = vadd.f32 %v634, %v700
    %v733 = vadd.f32 %v635, %v701
    %v734 = vadd.f32 %v636, %v702
    %v735 = vld [vmem:[%s637 + $0x1] sm:$0xff]
    %v736 = vld [vmem:[%s637 + $0x9] sm:$0xff]
    %v737 = vld [vmem:[%s637 + $0x19] sm:$0xff]
    %v738 = vld [vmem:[%s637 + $0x21] sm:$0xff]
    %v739 = vld [vmem:[%s637 + $0x31] sm:$0xff]
    %v740 = vld [vmem:[%s637 + $0x39] sm:$0xff]
    %v741 = vld [vmem:[%s637 + $0x49] sm:$0xff]
    %v742 = vld [vmem:[%s637 + $0x51] sm:$0xff]
    %v743 = vld [vmem:[%s637 + $0x61] sm:$0xff]
    %v744 = vld [vmem:[%s637 + $0x69] sm:$0xff]
    %v745 = vld [vmem:[%s637 + $0x79] sm:$0xff]
    %v746 = vld [vmem:[%s637 + $0x81] sm:$0xff]
    %v747 = vld [vmem:[%s637 + $0x91] sm:$0xff]
    %v748 = vld [vmem:[%s637 + $0x99] sm:$0xff]
    %v749 = vld [vmem:[%s637 + $0xa9] sm:$0xff]
    %v750 = vld [vmem:[%s637 + $0xb1] sm:$0xff]
    %v751 = vld [vmem:[%s637 + $0xc1] sm:$0xff]
    %v752 = vld [vmem:[%s637 + $0xc9] sm:$0xff]
    %v753 = vld [vmem:[%s637 + $0xd9] sm:$0xff]
    %v754 = vld [vmem:[%s637 + $0xe1] sm:$0xff]
    %v755 = vld [vmem:[%s637 + $0xf1] sm:$0xff]
    %v756 = vld [vmem:[%s637 + $0xf9] sm:$0xff]
    %v757 = vld [vmem:[%s637 + $0x109] sm:$0xff]
    %v758 = vld [vmem:[%s637 + $0x111] sm:$0xff]
    %v759 = vld [vmem:[%s637 + $0x121] sm:$0xff]
    %v760 = vld [vmem:[%s637 + $0x129] sm:$0xff]
    %v761 = vld [vmem:[%s637 + $0x139] sm:$0xff]
    %v762 = vld [vmem:[%s637 + $0x141] sm:$0xff]
    %v763 = vld [vmem:[%s637 + $0x151] sm:$0xff]
    %v764 = vld [vmem:[%s637 + $0x159] sm:$0xff]
    %v765 = vld [vmem:[%s637 + $0x169] sm:$0xff]
    %v766 = vld [vmem:[%s637 + $0x171] sm:$0xff]
    %v767 = vstv %s50
    %v768 = vmul.f32 %v767, %v735
    %v769 = vmul.f32 %v767, %v736
    %v770 = vmul.f32 %v767, %v737
    %v771 = vmul.f32 %v767, %v738
    %v772 = vmul.f32 %v767, %v739
    %v773 = vmul.f32 %v767, %v740
    %v774 = vmul.f32 %v767, %v741
    %v775 = vmul.f32 %v767, %v742
    %v776 = vmul.f32 %v767, %v743
    %v777 = vmul.f32 %v767, %v744
    %v778 = vmul.f32 %v767, %v745
    %v779 = vmul.f32 %v767, %v746
    %v780 = vmul.f32 %v767, %v747
    %v781 = vmul.f32 %v767, %v748
    %v782 = vmul.f32 %v767, %v749
    %v783 = vmul.f32 %v767, %v750
    %v784 = vmul.f32 %v767, %v751
    %v785 = vmul.f32 %v767, %v752
    %v786 = vmul.f32 %v767, %v753
    %v787 = vmul.f32 %v767, %v754
    %v788 = vmul.f32 %v767, %v755
    %v789 = vmul.f32 %v767, %v756
    %v790 = vmul.f32 %v767, %v757
    %v791 = vmul.f32 %v767, %v758
    %v792 = vmul.f32 %v767, %v759
    %v793 = vmul.f32 %v767, %v760
    %v794 = vmul.f32 %v767, %v761
    %v795 = vmul.f32 %v767, %v762
    %v796 = vmul.f32 %v767, %v763
    %v797 = vmul.f32 %v767, %v764
    %v798 = vmul.f32 %v767, %v765
    %v799 = vmul.f32 %v767, %v766
    %v800 = vadd.f32 %v703, %v768
    %v801 = vadd.f32 %v704, %v769
    %v802 = vadd.f32 %v705, %v770
    %v803 = vadd.f32 %v706, %v771
    %v804 = vadd.f32 %v707, %v772
    %v805 = vadd.f32 %v708, %v773
    %v806 = vadd.f32 %v709, %v774
    %v807 = vadd.f32 %v710, %v775
    %v808 = vadd.f32 %v711, %v776
    %v809 = vadd.f32 %v712, %v777
    %v810 = vadd.f32 %v713, %v778
    %v811 = vadd.f32 %v714, %v779
    %v812 = vadd.f32 %v715, %v780
    %v813 = vadd.f32 %v716, %v781
    %v814 = vadd.f32 %v717, %v782
    %v815 = vadd.f32 %v718, %v783
    %v816 = vadd.f32 %v719, %v784
    %v817 = vadd.f32 %v720, %v785
    %v818 = vadd.f32 %v721, %v786
    %v819 = vadd.f32 %v722, %v787
    %v820 = vadd.f32 %v723, %v788
    %v821 = vadd.f32 %v724, %v789
    %v822 = vadd.f32 %v725, %v790
    %v823 = vadd.f32 %v726, %v791
    %v824 = vadd.f32 %v727, %v792
    %v825 = vadd.f32 %v728, %v793
    %v826 = vadd.f32 %v729, %v794
    %v827 = vadd.f32 %v730, %v795
    %v828 = vadd.f32 %v731, %v796
    %v829 = vadd.f32 %v732, %v797
    %v830 = vadd.f32 %v733, %v798
    %v831 = vadd.f32 %v734, %v799
    %v832 = vld [vmem:[%s637 + $0x2] sm:$0xff]
    %v833 = vld [vmem:[%s637 + $0xa] sm:$0xff]
    %v834 = vld [vmem:[%s637 + $0x1a] sm:$0xff]
    %v835 = vld [vmem:[%s637 + $0x22] sm:$0xff]
    %v836 = vld [vmem:[%s637 + $0x32] sm:$0xff]
    %v837 = vld [vmem:[%s637 + $0x3a] sm:$0xff]
    %v838 = vld [vmem:[%s637 + $0x4a] sm:$0xff]
    %v839 = vld [vmem:[%s637 + $0x52] sm:$0xff]
    %v840 = vld [vmem:[%s637 + $0x62] sm:$0xff]
    %v841 = vld [vmem:[%s637 + $0x6a] sm:$0xff]
    %v842 = vld [vmem:[%s637 + $0x7a] sm:$0xff]
    %v843 = vld [vmem:[%s637 + $0x82] sm:$0xff]
    %v844 = vld [vmem:[%s637 + $0x92] sm:$0xff]
    %v845 = vld [vmem:[%s637 + $0x9a] sm:$0xff]
    %v846 = vld [vmem:[%s637 + $0xaa] sm:$0xff]
    %v847 = vld [vmem:[%s637 + $0xb2] sm:$0xff]
    %v848 = vld [vmem:[%s637 + $0xc2] sm:$0xff]
    %v849 = vld [vmem:[%s637 + $0xca] sm:$0xff]
    %v850 = vld [vmem:[%s637 + $0xda] sm:$0xff]
    %v851 = vld [vmem:[%s637 + $0xe2] sm:$0xff]
    %v852 = vld [vmem:[%s637 + $0xf2] sm:$0xff]
    %v853 = vld [vmem:[%s637 + $0xfa] sm:$0xff]
    %v854 = vld [vmem:[%s637 + $0x10a] sm:$0xff]
    %v855 = vld [vmem:[%s637 + $0x112] sm:$0xff]
    %v856 = vld [vmem:[%s637 + $0x122] sm:$0xff]
    %v857 = vld [vmem:[%s637 + $0x12a] sm:$0xff]
    %v858 = vld [vmem:[%s637 + $0x13a] sm:$0xff]
    %v859 = vld [vmem:[%s637 + $0x142] sm:$0xff]
    %v860 = vld [vmem:[%s637 + $0x152] sm:$0xff]
    %v861 = vld [vmem:[%s637 + $0x15a] sm:$0xff]
    %v862 = vld [vmem:[%s637 + $0x16a] sm:$0xff]
    %v863 = vld [vmem:[%s637 + $0x172] sm:$0xff]
    %v864 = vstv %s51
    %v865 = vmul.f32 %v864, %v832
    %v866 = vmul.f32 %v864, %v833
    %v867 = vmul.f32 %v864, %v834
    %v868 = vmul.f32 %v864, %v835
    %v869 = vmul.f32 %v864, %v836
    %v870 = vmul.f32 %v864, %v837
    %v871 = vmul.f32 %v864, %v838
    %v872 = vmul.f32 %v864, %v839
    %v873 = vmul.f32 %v864, %v840
    %v874 = vmul.f32 %v864, %v841
    %v875 = vmul.f32 %v864, %v842
    %v876 = vmul.f32 %v864, %v843
    %v877 = vmul.f32 %v864, %v844
    %v878 = vmul.f32 %v864, %v845
    %v879 = vmul.f32 %v864, %v846
    %v880 = vmul.f32 %v864, %v847
    %v881 = vmul.f32 %v864, %v848
    %v882 = vmul.f32 %v864, %v849
    %v883 = vmul.f32 %v864, %v850
    %v884 = vmul.f32 %v864, %v851
    %v885 = vmul.f32 %v864, %v852
    %v886 = vmul.f32 %v864, %v853
    %v887 = vmul.f32 %v864, %v854
    %v888 = vmul.f32 %v864, %v855
    %v889 = vmul.f32 %v864, %v856
    %v890 = vmul.f32 %v864, %v857
    %v891 = vmul.f32 %v864, %v858
    %v892 = vmul.f32 %v864, %v859
    %v893 = vmul.f32 %v864, %v860
    %v894 = vmul.f32 %v864, %v861
    %v895 = vmul.f32 %v864, %v862
    %v896 = vmul.f32 %v864, %v863
    %v897 = vadd.f32 %v800, %v865
    %v898 = vadd.f32 %v801, %v866
    %v899 = vadd.f32 %v802, %v867
    %v900 = vadd.f32 %v803, %v868
    %v901 = vadd.f32 %v804, %v869
    %v902 = vadd.f32 %v805, %v870
    %v903 = vadd.f32 %v806, %v871
    %v904 = vadd.f32 %v807, %v872
    %v905 = vadd.f32 %v808, %v873
    %v906 = vadd.f32 %v809, %v874
    %v907 = vadd.f32 %v810, %v875
    %v908 = vadd.f32 %v811, %v876
    %v909 = vadd.f32 %v812, %v877
    %v910 = vadd.f32 %v813, %v878
    %v911 = vadd.f32 %v814, %v879
    %v912 = vadd.f32 %v815, %v880
    %v913 = vadd.f32 %v816, %v881
    %v914 = vadd.f32 %v817, %v882
    %v915 = vadd.f32 %v818, %v883
    %v916 = vadd.f32 %v819, %v884
    %v917 = vadd.f32 %v820, %v885
    %v918 = vadd.f32 %v821, %v886
    %v919 = vadd.f32 %v822, %v887
    %v920 = vadd.f32 %v823, %v888
    %v921 = vadd.f32 %v824, %v889
    %v922 = vadd.f32 %v825, %v890
    %v923 = vadd.f32 %v826, %v891
    %v924 = vadd.f32 %v827, %v892
    %v925 = vadd.f32 %v828, %v893
    %v926 = vadd.f32 %v829, %v894
    %v927 = vadd.f32 %v830, %v895
    %v928 = vadd.f32 %v831, %v896
    %929 = vst [vmem:[#allocation8] sm:$0xff] %v897
    %930 = vst [vmem:[#allocation8 + $0x8] sm:$0xff] %v898
    %931 = vst [vmem:[#allocation8 + $0x10] sm:$0xff] %v899
    %932 = vst [vmem:[#allocation8 + $0x18] sm:$0xff] %v900
    %933 = vst [vmem:[#allocation8 + $0x20] sm:$0xff] %v901
    %934 = vst [vmem:[#allocation8 + $0x28] sm:$0xff] %v902
    %935 = vst [vmem:[#allocation8 + $0x30] sm:$0xff] %v903
    %936 = vst [vmem:[#allocation8 + $0x38] sm:$0xff] %v904
    %937 = vst [vmem:[#allocation8 + $0x40] sm:$0xff] %v905
    %938 = vst [vmem:[#allocation8 + $0x48] sm:$0xff] %v906
    %939 = vst [vmem:[#allocation8 + $0x50] sm:$0xff] %v907
    %940 = vst [vmem:[#allocation8 + $0x58] sm:$0xff] %v908
    %941 = vst [vmem:[#allocation8 + $0x60] sm:$0xff] %v909
    %942 = vst [vmem:[#allocation8 + $0x68] sm:$0xff] %v910
    %943 = vst [vmem:[#allocation8 + $0x70] sm:$0xff] %v911
    %944 = vst [vmem:[#allocation8 + $0x78] sm:$0xff] %v912
    %945 = vst [vmem:[#allocation8 + $0x80] sm:$0xff] %v913
    %946 = vst [vmem:[#allocation8 + $0x88] sm:$0xff] %v914
    %947 = vst [vmem:[#allocation8 + $0x90] sm:$0xff] %v915
    %948 = vst [vmem:[#allocation8 + $0x98] sm:$0xff] %v916
    %949 = vst [vmem:[#allocation8 + $0xa0] sm:$0xff] %v917
    %950 = vst [vmem:[#allocation8 + $0xa8] sm:$0xff] %v918
    %951 = vst [vmem:[#allocation8 + $0xb0] sm:$0xff] %v919
    %952 = vst [vmem:[#allocation8 + $0xb8] sm:$0xff] %v920
    %953 = vst [vmem:[#allocation8 + $0xc0] sm:$0xff] %v921
    %954 = vst [vmem:[#allocation8 + $0xc8] sm:$0xff] %v922
    %955 = vst [vmem:[#allocation8 + $0xd0] sm:$0xff] %v923
    %956 = vst [vmem:[#allocation8 + $0xd8] sm:$0xff] %v924
    %957 = vst [vmem:[#allocation8 + $0xe0] sm:$0xff] %v925
    %958 = vst [vmem:[#allocation8 + $0xe8] sm:$0xff] %v926
    %959 = vst [vmem:[#allocation8 + $0xf0] sm:$0xff] %v927
    %960 = vst [vmem:[#allocation8 + $0xf8] sm:$0xff] %v928
    // Predicated region
    $region22: #{tpu_custom_call.1} parent=1 // pred_check
      _
    $region23: #{tpu_custom_call.1} parent=1 // pred_check_branch
      %962 = sbr.rel (0) target = $region25
    $region24: #{tpu_custom_call.1} parent=1 // pred_region
      %s964 = ssub.s32 4096, 4096
      %965 = vsyncadd [#allocation5], %s964
      %s966 = sshll.u32 [#allocation8], 4
      %s967 = int_to_ptr.vmem [resolvable:$true] %s966
      %972 = dma.vmem_to_hbm [thread:$0]  %s967, 4096, %s3, [#allocation5], 128, 128, 8
    $region25: #{tpu_custom_call.1} parent=1 // pred_fallthru
      _
    // Predicated region
    $region26: #{tpu_custom_call.1} parent=1 // pred_check
      _
    $region27: #{tpu_custom_call.1} parent=1 // pred_check_branch
      %974 = sbr.rel (0) target = $region29
    $region28: #{tpu_custom_call.1} parent=1 // pred_region
      %975 = dma.done [#allocation5], 4096
    $region29: #{tpu_custom_call.1} parent=1 // pred_fallthru
      _
    %976 = vsyncpa [#allocation4], 1
    %977 = vsyncpa [#allocation5], 1
    %978 = vsyncpa [#allocation6], 1

</llo_original>
